<compile_context>
chip_gen: v7x
topology: tpu7x:2x2x1
jax: 0.10.0
libtpu: 0.0.40
codegen_flags: <defaults>
</compile_context>

<pallas_src>
import jax
import jax.numpy as jnp
from jax.experimental import pallas as pl
from jax.experimental.pallas import tpu as pltpu

# ----------------------------- configuration --------------------------------
B, IN_CHANS = 2, 1
D = H = W = 16
PS = (4, 4, 4)                        # encoder.patch_size
STRIDE = 4                            # encoder_stride
NUM_FEATURES = 32                     # encoder.num_features
R3 = STRIDE ** 3                      # decoder1 out channels (64)
P = IN_CHANS * PS[0] * PS[1] * PS[2]  # flattened patch dim (64)
DP, HP, WP = D // PS[0], H // PS[1], W // PS[2]
N_TOK = B * DP * HP * WP              # 128 tokens (lane dim)
BN_EPS = 1e-5

assert IN_CHANS == 1, "in-kernel token-layout L1/BN identity requires in_chans == 1"
assert N_TOK % 128 == 0


# ------------------------------- kernel --------------------------------------
def _simmim_fused_kernel(xpt_ref, wct_ref, mask_ref, bvec_ref, gb_ref,
                         y_ref, loss_ref):
    # layouts:
    #   xpt_ref  (P, N_TOK)  f32  patch voxels, tokens on the 128-lane axis
    #   wct_ref  (R3, P)     bf16 folded weight (we @ wd)^T
    #   mask_ref (1, N_TOK)  f32  per-token mask (0/1), lane-dense row
    #   bvec_ref (R3, 2)     f32  column 0 = bc, column 1 = mtok_d - bc
    #   gb_ref   SMEM (2,)   f32  = [bn_gamma, bn_beta]
    #   y_ref    (R3, N_TOK) f32  lane-dense reconstruction (pre pixel-shuffle)
    #   loss_ref SMEM (1,)   f32  scalar L1 loss
    xpt = xpt_ref[...]

    # fused encoder patch-embed + decoder1 (single folded MXU matmul)
    raw = jnp.dot(wct_ref[...], xpt.astype(jnp.bfloat16),
                  preferred_element_type=jnp.float32)            # (R3, N_TOK)

    # mask-token blend, bias formed in-kernel with one broadcast FMA:
    #   out = keep*(raw + bc) + mask*mtok_d
    #       = raw*keep + bc + mask*(mtok_d - bc)        (exact for 0/1 mask)
    m = mask_ref[...]                                            # (1, N_TOK)
    keep = 1.0 - m
    bc = bvec_ref[:, 0:1]                                        # (R3, 1)
    dlt = bvec_ref[:, 1:2]                                       # (R3, 1)
    z = raw * keep + (bc + m * dlt)                              # (R3, N_TOK)

    # BatchNorm3d(1), training-mode batch statistics (two-pass, biased var)
    n = jnp.float32(z.size)
    mean = jnp.sum(z) / n
    zc = z - mean
    var = jnp.sum(zc * zc) / n
    inv_std = jax.lax.rsqrt(var + BN_EPS)
    y = zc * (gb_ref[0] * inv_std) + gb_ref[1]
    y_ref[...] = y

    # L1 recon loss: with in_chans == 1, element (k, t) of the token layout is
    # exactly the voxel the pixel shuffle places at the matching (d, h, w), so
    # sum|x - x_rec| over all voxels can be taken here without the transpose.
    # (n == B * C * D * H * W, the module's denominator.)
    loss_ref[0] = jnp.sum(jnp.abs(xpt - y)) / n


# ------------------------------ wrapper --------------------------------------
def init_params(key):
    k = jax.random.split(key, 4)
    we = 0.02 * jax.random.normal(k[0], (P, NUM_FEATURES), jnp.float32)
    be = jnp.zeros((NUM_FEATURES,), jnp.float32)
    mask_token = 0.02 * jax.random.normal(k[1], (NUM_FEATURES,), jnp.float32)
    wd = 0.02 * jax.random.normal(k[2], (NUM_FEATURES, R3), jnp.float32)
    bd = jnp.zeros((R3,), jnp.float32)
    gamma = jnp.float32(1.0)   # BatchNorm3d default weight
    beta = jnp.float32(0.0)    # BatchNorm3d default bias
    return dict(we=we, be=be, mask_token=mask_token, wd=wd, bd=bd,
                gamma=gamma, beta=beta)


@jax.jit
def simmim_forward(x, mask, params):
    # ----- patch extraction (glue): NCDHW -> (P, N_TOK), tokens on lanes -----
    xpt = x.reshape(B, IN_CHANS, DP, PS[0], HP, PS[1], WP, PS[2])
    xpt = xpt.transpose(1, 3, 5, 7, 0, 2, 4, 6).reshape(P, N_TOK)
    xpt = xpt.astype(jnp.float32)   # keep f32 so the L1 loss sees exact x

    # ----- fold decoder1 (1x1x1 conv) into the patch-embed matmul ------------
    wc_t = (params["we"] @ params["wd"]).T.astype(jnp.bfloat16)     # (R3, P)
    bc = params["be"] @ params["wd"] + params["bd"]                 # (R3,)
    mtok_d = params["mask_token"] @ params["wd"] + params["bd"]     # (R3,)
    bvec = jnp.stack([bc, mtok_d - bc], axis=1).astype(jnp.float32)  # (R3, 2)

    m_lane = mask.reshape(1, N_TOK).astype(jnp.float32)             # (1, N_TOK)
    gb = jnp.stack([params["gamma"], params["beta"]]).astype(jnp.float32)

    # ----- single fused Pallas kernel (embed+mask+decoder+BN+L1) -------------
    # TODO(synk): at larger batch/resolution, first widen the token (lane)
    # axis of this single matmul (keep N_TOK a multiple of 256 on v6e/v7x,
    # 128 on v5e); only then introduce a token-axis grid with
    # dimension_semantics=("parallel",) for v7x's 2 TCs, converting BN mean/
    # var and the L1 sum into per-block partial sums combined in a tiny second
    # pass, and sizing blocks against v7x's 64 MiB VMEM (vmem_limit_bytes).
    y_t, loss_v = pl.pallas_call(
        _simmim_fused_kernel,
        out_shape=(jax.ShapeDtypeStruct((R3, N_TOK), jnp.float32),
                   jax.ShapeDtypeStruct((1,), jnp.float32)),
        in_specs=[pl.BlockSpec(memory_space=pltpu.VMEM),   # xpt
                  pl.BlockSpec(memory_space=pltpu.VMEM),   # wc_t
                  pl.BlockSpec(memory_space=pltpu.VMEM),   # mask row
                  pl.BlockSpec(memory_space=pltpu.VMEM),   # [bc, mtok_d - bc]
                  pl.BlockSpec(memory_space=pltpu.SMEM)],  # gamma/beta
        out_specs=(pl.BlockSpec(memory_space=pltpu.VMEM),
                   pl.BlockSpec(memory_space=pltpu.SMEM)),
    )(xpt, wc_t, m_lane, bvec, gb)

    # ----- PixelShuffle3d(stride): (R3, N_TOK) -> (B, 1, D, H, W) (glue) -----
    x_rec = y_t.reshape(PS[0], PS[1], PS[2], B, DP, HP, WP)
    x_rec = x_rec.transpose(3, 4, 0, 5, 1, 6, 2).reshape(B, 1, D, H, W)

    # ----- mask upsample to voxel resolution (matches repeat_interleave) -----
    mask_full = jnp.broadcast_to(
        mask[:, :, None, :, None, :, None],
        (B, DP, PS[0], HP, PS[1], WP, PS[2])).reshape(B, 1, D, H, W)
    mask_full = mask_full.astype(mask.dtype)

    return loss_v[0], x_rec, x, mask_full


# -------------------------------- main ---------------------------------------
if __name__ == "__main__":
    key = jax.random.PRNGKey(0)
    kx, km, kp = jax.random.split(key, 3)

    x = jax.random.normal(kx, (B, IN_CHANS, D, H, W), jnp.float32)
    mask = (jax.random.uniform(km, (B, DP, HP, WP)) < 0.6).astype(jnp.float32)
    params = init_params(kp)

    loss, x_rec, x_out, mask_full = simmim_forward(x, mask, params)
    jax.block_until_ready((loss, x_rec, x_out, mask_full))

    assert x_rec.shape == (B, 1, D, H, W)
    assert mask_full.shape == (B, 1, D, H, W)
    assert loss.shape == ()
    print("KERNEL_OK")
</pallas_src>

<mosaic_0001>
module attributes {stable_mosaic.version = 11 : i64} {
  func.func @_simmim_fused_kernel(%arg0: memref<64x128xf32, #tpu.memory_space<vmem>>, %arg1: memref<64x64xbf16, #tpu.memory_space<vmem>>, %arg2: memref<1x128xf32, #tpu.memory_space<vmem>>, %arg3: memref<64x2xf32, #tpu.memory_space<vmem>>, %arg4: memref<2xf32, #tpu.memory_space<smem>>, %arg5: memref<64x128xf32, #tpu.memory_space<vmem>>, %arg6: memref<1xf32, #tpu.memory_space<smem>>) attributes {dimension_semantics = [], scalar_prefetch = 0 : i64, scratch_operands = 0 : i64, tpu.core_type = #tpu.core_type<tc>} {
    %c0 = arith.constant 0 : index
    %c0_0 = arith.constant 0 : index
    %0 = vector.load %arg0[%c0, %c0_0] : memref<64x128xf32, #tpu.memory_space<vmem>>, vector<64x128xf32>
    %c0_1 = arith.constant 0 : index
    %c0_2 = arith.constant 0 : index
    %1 = vector.load %arg1[%c0_1, %c0_2] : memref<64x64xbf16, #tpu.memory_space<vmem>>, vector<64x64xbf16>
    %2 = arith.truncf %0 : vector<64x128xf32> to vector<64x128xbf16>
    %cst = arith.constant dense<0.000000e+00> : vector<64x128xf32>
    %3 = tpu.matmul %1, %2, %cst {dimension_numbers = #tpu.dot_dimension_numbers<[1], [0], [0], [1], [0, 0, 1, 1], [], []>} : vector<64x64xbf16>, vector<64x128xbf16>, vector<64x128xf32> -> vector<64x128xf32>
    %c0_3 = arith.constant 0 : index
    %c0_4 = arith.constant 0 : index
    %4 = vector.load %arg2[%c0_3, %c0_4] : memref<1x128xf32, #tpu.memory_space<vmem>>, vector<1x128xf32>
    %cst_5 = arith.constant 1.000000e+00 : f32
    %5 = vector.broadcast %cst_5 : f32 to vector<1x128xf32>
    %6 = arith.subf %5, %4 : vector<1x128xf32>
    %c0_6 = arith.constant 0 : index
    %c0_7 = arith.constant 0 : index
    %7 = vector.load %arg3[%c0_6, %c0_7] : memref<64x2xf32, #tpu.memory_space<vmem>>, vector<64x1xf32>
    %c0_8 = arith.constant 0 : index
    %c1 = arith.constant 1 : index
    %8 = vector.load %arg3[%c0_8, %c1] : memref<64x2xf32, #tpu.memory_space<vmem>>, vector<64x1xf32>
    %9 = vector.broadcast %6 : vector<1x128xf32> to vector<64x128xf32>
    %10 = arith.mulf %3, %9 : vector<64x128xf32>
    %11 = vector.broadcast %4 : vector<1x128xf32> to vector<64x128xf32>
    %12 = vector.broadcast %8 : vector<64x1xf32> to vector<64x128xf32>
    %13 = arith.mulf %11, %12 : vector<64x128xf32>
    %14 = vector.broadcast %7 : vector<64x1xf32> to vector<64x128xf32>
    %15 = arith.addf %14, %13 : vector<64x128xf32>
    %16 = arith.addf %10, %15 : vector<64x128xf32>
    %17 = vector.shape_cast %16 : vector<64x128xf32> to vector<1x64x128xf32>
    %cst_9 = arith.constant dense<0.000000e+00> : vector<1xf32>
    %18 = vector.multi_reduction <add>, %17, %cst_9 [1, 2] : vector<1x64x128xf32> to vector<1xf32>
    %19 = vector.shape_cast %18 : vector<1xf32> to vector<1x1x1xf32>
    %20 = vector.extract %19[0, 0, 0] : f32 from vector<1x1x1xf32>
    %cst_10 = arith.constant 8.192000e+03 : f32
    %21 = arith.divf %20, %cst_10 : f32
    %22 = vector.broadcast %21 : f32 to vector<64x128xf32>
    %23 = arith.subf %16, %22 : vector<64x128xf32>
    %24 = arith.mulf %23, %23 : vector<64x128xf32>
    %25 = vector.shape_cast %24 : vector<64x128xf32> to vector<1x64x128xf32>
    %cst_11 = arith.constant dense<0.000000e+00> : vector<1xf32>
    %26 = vector.multi_reduction <add>, %25, %cst_11 [1, 2] : vector<1x64x128xf32> to vector<1xf32>
    %27 = vector.shape_cast %26 : vector<1xf32> to vector<1x1x1xf32>
    %28 = vector.extract %27[0, 0, 0] : f32 from vector<1x1x1xf32>
    %cst_12 = arith.constant 8.192000e+03 : f32
    %29 = arith.divf %28, %cst_12 : f32
    %cst_13 = arith.constant 9.99999974E-6 : f32
    %30 = arith.addf %29, %cst_13 : f32
    %31 = math.rsqrt %30 : f32
    %c0_14 = arith.constant 0 : index
    %32 = memref.load %arg4[%c0_14] : memref<2xf32, #tpu.memory_space<smem>>
    %33 = arith.mulf %32, %31 : f32
    %34 = vector.broadcast %33 : f32 to vector<64x128xf32>
    %35 = arith.mulf %23, %34 : vector<64x128xf32>
    %c1_15 = arith.constant 1 : index
    %36 = memref.load %arg4[%c1_15] : memref<2xf32, #tpu.memory_space<smem>>
    %37 = vector.broadcast %36 : f32 to vector<64x128xf32>
    %38 = arith.addf %35, %37 : vector<64x128xf32>
    %c0_16 = arith.constant 0 : index
    %c0_17 = arith.constant 0 : index
    %39 = vector.load %arg5[%c0_16, %c0_17] : memref<64x128xf32, #tpu.memory_space<vmem>>, vector<64x128xf32>
    tpu.vector_store %arg5[%c0_16, %c0_17], %38 {strides = array<i32>} : memref<64x128xf32, #tpu.memory_space<vmem>>, vector<64x128xf32>,
    %40 = arith.subf %0, %38 : vector<64x128xf32>
    %41 = math.absf %40 : vector<64x128xf32>
    %42 = vector.shape_cast %41 : vector<64x128xf32> to vector<1x64x128xf32>
    %cst_18 = arith.constant dense<0.000000e+00> : vector<1xf32>
    %43 = vector.multi_reduction <add>, %42, %cst_18 [1, 2] : vector<1x64x128xf32> to vector<1xf32>
    %44 = vector.shape_cast %43 : vector<1xf32> to vector<1x1x1xf32>
    %45 = vector.extract %44[0, 0, 0] : f32 from vector<1x1x1xf32>
    %cst_19 = arith.constant 8.192000e+03 : f32
    %46 = arith.divf %45, %cst_19 : f32
    %c0_20 = arith.constant 0 : index
    %47 = memref.load %arg6[%c0_20] : memref<1xf32, #tpu.memory_space<smem>>
    memref.store %46, %arg6[%c0_20] : memref<1xf32, #tpu.memory_space<smem>>
    return
  }
}

</mosaic_0001>

<llo_original>
// kernel: simmim_forward.1
$region0: #{simmim_forward.1}
  #allocation0 [shape = 'u32[]', space=smem, size = 0x4, offset = 0x4, fixed_abs, tag = 'smem constant byte address 0x4 - core index']
  #allocation1 [shape = 'u32[144,128]{1,0:T(1,128)}', space=vmem, size = 0x12000, scoped, tag = 'internal scratch']
  %s0 = inlined_call_operand.vmem [shape: f32[64,128], index: 0, kind: input, shape index: {}]
  %s1 = inlined_call_operand.vmem [shape: bf16[64,64], index: 1, kind: input, shape index: {}]
  %s2 = inlined_call_operand.vmem [shape: f32[1,128], index: 2, kind: input, shape index: {}]
  %s3 = inlined_call_operand.vmem [shape: f32[64,2], index: 3, kind: input, shape index: {}]
  %s4 = inlined_call_operand.vmem [shape: f32[2], index: 4, kind: input, shape index: {}]
  %s5 = inlined_call_operand.vmem [shape: f32[64,128], index: 5, kind: output, shape index: {0}]
  %s6 = inlined_call_operand.hbm [shape: f32[1], index: 6, kind: output, shape index: {1}]
  %7 = xla_tuple %s5, %s6
  %s8 = sld [smem:[#allocation0]]
  $region42: #{simmim_forward.1} parent=0
    _
  %s10 = ssub.s32 1, %s8
  %s11 = scalar_select 0, %s10, %s8
  $region1: #{simmim_forward.1} parent=0
    #allocation2 [shape = 'u8[512]{0}', space=smem, size = 0x200, scoped, tag = 'input window, operand 4, single buffered']
    #allocation3 [shape = 's32[1]{0}', space=sflag, size = 0x4, scoped, tag = 'scoped memory for simmim_forward.1']
    #allocation4 [shape = 's32[1]{0}', space=sflag, size = 0x4, scoped, tag = 'scoped memory for simmim_forward.1']
    #allocation5 [shape = 'u8[512]{0}', space=smem, size = 0x200, scoped, tag = 'output window, operand 1, single buffered']
    %12 = vsyncpa [#allocation4], 0
    %13 = vsyncpa [#allocation3], 0
    // Predicated region
    $region2: #{simmim_forward.1} parent=1 // pred_check
      _
    $region3: #{simmim_forward.1} parent=1 // pred_check_branch
      %15 = sbr.rel (0) target = $region5
    $region4: #{simmim_forward.1} parent=1 // pred_region
      _
    $region5: #{simmim_forward.1} parent=1 // pred_fallthru
      _
    // Predicated region
    $region6: #{simmim_forward.1} parent=1 // pred_check
      _
    $region7: #{simmim_forward.1} parent=1 // pred_check_branch
      %17 = sbr.rel (0) target = $region9
    $region8: #{simmim_forward.1} parent=1 // pred_region
      _
    $region9: #{simmim_forward.1} parent=1 // pred_fallthru
      _
    // Predicated region
    $region10: #{simmim_forward.1} parent=1 // pred_check
      _
    $region11: #{simmim_forward.1} parent=1 // pred_check_branch
      %19 = sbr.rel (0) target = $region13
    $region12: #{simmim_forward.1} parent=1 // pred_region
      _
    $region13: #{simmim_forward.1} parent=1 // pred_fallthru
      _
    // Predicated region
    $region14: #{simmim_forward.1} parent=1 // pred_check
      _
    $region15: #{simmim_forward.1} parent=1 // pred_check_branch
      %21 = sbr.rel (0) target = $region17
    $region16: #{simmim_forward.1} parent=1 // pred_region
      _
    $region17: #{simmim_forward.1} parent=1 // pred_fallthru
      _
    // Predicated region
    $region18: #{simmim_forward.1} parent=1 // pred_check
      _
    $region19: #{simmim_forward.1} parent=1 // pred_check_branch
      %23 = sbr.rel (0) target = $region21
    $region20: #{simmim_forward.1} parent=1 // pred_region
      %s25 = ssub.s32 16, 16
      %26 = vsyncadd [#allocation4], %s25
      %s28 = sshll.u32 %s4, 4
      %s29 = int_to_ptr.vmem [resolvable:$true] %s28
      %31 = dma.vmem_to_smem %s29, 16, [#allocation2], [#allocation4]
    $region21: #{simmim_forward.1} parent=1 // pred_fallthru
      _
    // Predicated region
    $region22: #{simmim_forward.1} parent=1 // pred_check
      _
    $region23: #{simmim_forward.1} parent=1 // pred_check_branch
      %33 = sbr.rel (0) target = $region25
    $region24: #{simmim_forward.1} parent=1 // pred_region
      %34 = dma.done [#allocation4], 16
    $region25: #{simmim_forward.1} parent=1 // pred_fallthru
      _
    %35 = sfence
    %v37 = vld [vmem:[%s0] sm:$0xff]
    %v38 = vld [vmem:[%s0 + $0x8] sm:$0xff]
    %v39 = vld [vmem:[%s0 + $0x10] sm:$0xff]
    %v40 = vld [vmem:[%s0 + $0x18] sm:$0xff]
    %v41 = vld [vmem:[%s0 + $0x20] sm:$0xff]
    %v42 = vld [vmem:[%s0 + $0x28] sm:$0xff]
    %v43 = vld [vmem:[%s0 + $0x30] sm:$0xff]
    %v44 = vld [vmem:[%s0 + $0x38] sm:$0xff]
    %v45 = vld [vmem:[%s1] sm:$0xf]
    %v46 = vld [vmem:[%s1 + $0x4] sm:$0xf]
    %v47 = vld [vmem:[%s1 + $0x8] sm:$0xf]
    %v48 = vld [vmem:[%s1 + $0xc] sm:$0xf]
    %v49 = vld [vmem:[%s1 + $0x10] sm:$0xf]
    %v50 = vld [vmem:[%s1 + $0x14] sm:$0xf]
    %v51 = vld [vmem:[%s1 + $0x18] sm:$0xf]
    %v52 = vld [vmem:[%s1 + $0x1c] sm:$0xf]
    %v53 = vpack.c.bf16 %v38, %v37
    %v54 = vpack.c.bf16 %v40, %v39
    %v55 = vpack.c.bf16 %v42, %v41
    %v56 = vpack.c.bf16 %v44, %v43
    %v65 = vunpack.c.l.b16 %v45
    %v66 = vunpack.c.l.b16 %v46
    %v67 = vunpack.c.l.b16 %v47
    %v68 = vunpack.c.l.b16 %v48
    %v69 = vunpack.c.l.b16 %v49
    %v70 = vunpack.c.l.b16 %v50
    %v71 = vunpack.c.l.b16 %v51
    %v72 = vunpack.c.l.b16 %v52
    %v73 = vpack.c.b16 %v66, %v65
    %v74 = vpack.c.b16 %v68, %v67
    %v75 = vpack.c.b16 %v70, %v69
    %v76 = vpack.c.b16 %v72, %v71
    %vm77 = vcmask 523264
    %v79 = vsel %vm77, %v73, 0
    %v82 = vsel %vm77, %v74, 0
    %v85 = vsel %vm77, %v75, 0
    %v88 = vsel %vm77, %v76, 0
    %90 = vmatprep.subr.bf16.mxu0 0
    %91 = vmatpush1.bf16.msra.mxu0 %v53
    %92 = vmatprep.subr.bf16.mxu0 0
    %93 = vmatpush1.bf16.msra.mxu0 %v54
    %94 = vmatprep.subr.bf16.mxu0 0
    %95 = vmatpush1.bf16.msra.mxu0 %v55
    %96 = vmatprep.subr.bf16.mxu0 0
    %97 = vmatpush1.bf16.msra.mxu0 %v56
    %98 = vmatprep.subr.bf16.mxu0 0
    %99 = vmatpush1.bf16.msra.mxu0 0
    %100 = vmatprep.subr.bf16.mxu0 0
    %101 = vmatpush1.bf16.msra.mxu0 0
    %102 = vmatprep.subr.bf16.mxu0 0
    %103 = vmatpush1.bf16.msra.mxu0 0
    %104 = vmatprep.subr.bf16.mxu0 0
    %105 = vmatpush1.bf16.msra.mxu0 0
    %106 = vmatprep.subr.bf16.mxu0 0
    %107 = vmatpush1.bf16.msra.mxu0 0
    %108 = vmatprep.subr.bf16.mxu0 0
    %109 = vmatpush1.bf16.msra.mxu0 0
    %110 = vmatprep.subr.bf16.mxu0 0
    %111 = vmatpush1.bf16.msra.mxu0 0
    %112 = vmatprep.subr.bf16.mxu0 0
    %113 = vmatpush1.bf16.msra.mxu0 0
    %114 = vmatprep.subr.bf16.mxu0 0
    %115 = vmatpush1.bf16.msra.mxu0 0
    %116 = vmatprep.subr.bf16.mxu0 0
    %117 = vmatpush1.bf16.msra.mxu0 0
    %118 = vmatprep.subr.bf16.mxu0 0
    %119 = vmatpush1.bf16.msra.mxu0 0
    %120 = vmatprep.subr.bf16.mxu0 0
    %121 = vmatpush1.bf16.msra.mxu0 0
    %122 = vmatprep.mubr.bf16.mxu0 0
    %123 = vmatmul.mubr.bf16.gmra.mrb[0].mxu0 %v79
    %v124 = vpop.f32.mrb[0].mxu0
    %v125 = vadd.f32 0.0, %v124
    %v126 = vpop.f32.mrb[0].mxu0
    %v127 = vpop.f32.mrb[0].mxu0
    %v128 = vadd.f32 0.0, %v127
    %v129 = vpop.f32.mrb[0].mxu0
    %130 = vmatprep.mubr.bf16.mxu0 0
    %131 = vmatmul.mubr.bf16.gmra.mrb[0].mxu0 %v82
    %v132 = vpop.f32.mrb[0].mxu0
    %v133 = vadd.f32 0.0, %v132
    %v134 = vpop.f32.mrb[0].mxu0
    %v135 = vpop.f32.mrb[0].mxu0
    %v136 = vadd.f32 0.0, %v135
    %v137 = vpop.f32.mrb[0].mxu0
    %138 = vmatprep.mubr.bf16.mxu0 0
    %139 = vmatmul.mubr.bf16.gmra.mrb[0].mxu0 %v85
    %v140 = vpop.f32.mrb[0].mxu0
    %v141 = vadd.f32 0.0, %v140
    %v142 = vpop.f32.mrb[0].mxu0
    %v143 = vpop.f32.mrb[0].mxu0
    %v144 = vadd.f32 0.0, %v143
    %v145 = vpop.f32.mrb[0].mxu0
    %146 = vmatprep.mubr.bf16.mxu0 0
    %147 = vmatmul.mubr.bf16.gmra.mrb[0].mxu0 %v88
    %v148 = vpop.f32.mrb[0].mxu0
    %v149 = vadd.f32 0.0, %v148
    %v150 = vpop.f32.mrb[0].mxu0
    %v151 = vpop.f32.mrb[0].mxu0
    %v152 = vadd.f32 0.0, %v151
    %v153 = vpop.f32.mrb[0].mxu0
    %154 = vdwg.mxu0
    %v155 = vld [vmem:[%s2] sm:$0x1]
    %v156 = vsub.f32 1.0, %v155
    %v157 = vld [vmem:[%s3] sm:$0xff]
    %v158 = vld [vmem:[%s3 + $0x8] sm:$0xff]
    %v159 = vld [vmem:[%s3 + $0x10] sm:$0xff]
    %v160 = vld [vmem:[%s3 + $0x18] sm:$0xff]
    %v161 = vld [vmem:[%s3 + $0x20] sm:$0xff]
    %v162 = vld [vmem:[%s3 + $0x28] sm:$0xff]
    %v163 = vld [vmem:[%s3 + $0x30] sm:$0xff]
    %v164 = vld [vmem:[%s3 + $0x38] sm:$0xff]
    %v166 = vlaneseq
    %v167 = vshrl.u32 %v166, 7
    %v168 = vsub.s32 0, %v167
    %v169 = vrot.slane %v156, %v168
    %v171 = vmul.f32 %v125, %v169
    %v172 = vmul.f32 %v128, %v169
    %v173 = vmul.f32 %v133, %v169
    %v174 = vmul.f32 %v136, %v169
    %v175 = vmul.f32 %v141, %v169
    %v176 = vmul.f32 %v144, %v169
    %v177 = vmul.f32 %v149, %v169
    %v178 = vmul.f32 %v152, %v169
    %v180 = vlaneseq
    %v181 = vshrl.u32 %v180, 7
    %v182 = vsub.s32 0, %v181
    %v183 = vrot.slane %v155, %v182
    %186 = vset.pattern.permute.xlu0 1
    %187 = vperm.xlu0 %186, %v157
    %v188 = vpop.permute.xlu0 %187
    %191 = vset.pattern.permute.xlu0 1
    %192 = vperm.xlu0 %191, %v158
    %v193 = vpop.permute.xlu0 %192
    %196 = vset.pattern.permute.xlu0 1
    %197 = vperm.xlu0 %196, %v159
    %v198 = vpop.permute.xlu0 %197
    %201 = vset.pattern.permute.xlu0 1
    %202 = vperm.xlu0 %201, %v160
    %v203 = vpop.permute.xlu0 %202
    %206 = vset.pattern.permute.xlu0 1
    %207 = vperm.xlu0 %206, %v161
    %v208 = vpop.permute.xlu0 %207
    %211 = vset.pattern.permute.xlu0 1
    %212 = vperm.xlu0 %211, %v162
    %v213 = vpop.permute.xlu0 %212
    %216 = vset.pattern.permute.xlu0 1
    %217 = vperm.xlu0 %216, %v163
    %v218 = vpop.permute.xlu0 %217
    %221 = vset.pattern.permute.xlu0 1
    %222 = vperm.xlu0 %221, %v164
    %v223 = vpop.permute.xlu0 %222
    %v225 = vmul.f32 %v183, %v188
    %v226 = vmul.f32 %v183, %v193
    %v227 = vmul.f32 %v183, %v198
    %v228 = vmul.f32 %v183, %v203
    %v229 = vmul.f32 %v183, %v208
    %v230 = vmul.f32 %v183, %v213
    %v231 = vmul.f32 %v183, %v218
    %v232 = vmul.f32 %v183, %v223
    %233 = vset.pattern.permute.xlu0 0
    %234 = vperm.xlu0 %233, %v157
    %v235 = vpop.permute.xlu0 %234
    %237 = vset.pattern.permute.xlu0 0
    %238 = vperm.xlu0 %237, %v158
    %v239 = vpop.permute.xlu0 %238
    %241 = vset.pattern.permute.xlu0 0
    %242 = vperm.xlu0 %241, %v159
    %v243 = vpop.permute.xlu0 %242
    %245 = vset.pattern.permute.xlu0 0
    %246 = vperm.xlu0 %245, %v160
    %v247 = vpop.permute.xlu0 %246
    %249 = vset.pattern.permute.xlu0 0
    %250 = vperm.xlu0 %249, %v161
    %v251 = vpop.permute.xlu0 %250
    %253 = vset.pattern.permute.xlu0 0
    %254 = vperm.xlu0 %253, %v162
    %v255 = vpop.permute.xlu0 %254
    %257 = vset.pattern.permute.xlu0 0
    %258 = vperm.xlu0 %257, %v163
    %v259 = vpop.permute.xlu0 %258
    %261 = vset.pattern.permute.xlu0 0
    %262 = vperm.xlu0 %261, %v164
    %v263 = vpop.permute.xlu0 %262
    %v265 = vadd.f32 %v235, %v225
    %v266 = vadd.f32 %v239, %v226
    %v267 = vadd.f32 %v243, %v227
    %v268 = vadd.f32 %v247, %v228
    %v269 = vadd.f32 %v251, %v229
    %v270 = vadd.f32 %v255, %v230
    %v271 = vadd.f32 %v259, %v231
    %v272 = vadd.f32 %v263, %v232
    %v273 = vadd.f32 %v171, %v265
    %v274 = vadd.f32 %v172, %v266
    %v275 = vadd.f32 %v173, %v267
    %v276 = vadd.f32 %v174, %v268
    %v277 = vadd.f32 %v175, %v269
    %v278 = vadd.f32 %v176, %v270
    %v279 = vadd.f32 %v177, %v271
    %v280 = vadd.f32 %v178, %v272
    %v281 = vadd.f32 %v273, %v274
    %v282 = vadd.f32 %v281, %v275
    %v283 = vadd.f32 %v282, %v276
    %v284 = vadd.f32 %v283, %v277
    %v285 = vadd.f32 %v284, %v278
    %v286 = vadd.f32 %v285, %v279
    %v287 = vadd.f32 %v286, %v280
    %288 = vadd.xlane.f32.xlu0 %v287
    %v289 = vpop.xlane.xlu0 %288
    %v290 = vrot.slane %v289, 4
    %v291 = vadd.f32 %v289, %v290
    %v292 = vrot.slane %v291, 2
    %v293 = vadd.f32 %v291, %v292
    %v294 = vrot.slane %v293, 1
    %v295 = vadd.f32 %v293, %v294
    %s296 = vtos %v295
    %v297 = vrcp.pop 8192.0
    %s298 = vtos %v297
    %s299 = smul.f32 %s296, %s298
    %v300 = vstv %s299
    %v301 = vsub.f32 %v273, %v300
    %v302 = vsub.f32 %v274, %v300
    %v303 = vsub.f32 %v275, %v300
    %v304 = vsub.f32 %v276, %v300
    %v305 = vsub.f32 %v277, %v300
    %v306 = vsub.f32 %v278, %v300
    %v307 = vsub.f32 %v279, %v300
    %v308 = vsub.f32 %v280, %v300
    %v309 = vmul.f32 %v301, %v301
    %v310 = vmul.f32 %v302, %v302
    %v311 = vmul.f32 %v303, %v303
    %v312 = vmul.f32 %v304, %v304
    %v313 = vmul.f32 %v305, %v305
    %v314 = vmul.f32 %v306, %v306
    %v315 = vmul.f32 %v307, %v307
    %v316 = vmul.f32 %v308, %v308
    %v317 = vadd.f32 %v309, %v310
    %v318 = vadd.f32 %v317, %v311
    %v319 = vadd.f32 %v318, %v312
    %v320 = vadd.f32 %v319, %v313
    %v321 = vadd.f32 %v320, %v314
    %v322 = vadd.f32 %v321, %v315
    %v323 = vadd.f32 %v322, %v316
    %324 = vadd.xlane.f32.xlu0 %v323
    %v325 = vpop.xlane.xlu0 %324
    %v326 = vrot.slane %v325, 4
    %v327 = vadd.f32 %v325, %v326
    %v328 = vrot.slane %v327, 2
    %v329 = vadd.f32 %v327, %v328
    %v330 = vrot.slane %v329, 1
    %v331 = vadd.f32 %v329, %v330
    %s332 = vtos %v331
    %v333 = vrcp.pop 8192.0
    %s334 = vtos %v333
    %s335 = smul.f32 %s332, %s334
    %s336 = sadd.f32 %s335, 1e-05
    %v337 = vstv %s336
    %v338 = vrsqrt.pop %v337
    %s339 = vtos %v338
    %s340 = sld [smem:[#allocation2]]
    %s341 = smul.f32 %s340, %s339
    %v342 = vstv %s341
    %v343 = vmul.f32 %v301, %v342
    %v344 = vmul.f32 %v302, %v342
    %v345 = vmul.f32 %v303, %v342
    %v346 = vmul.f32 %v304, %v342
    %v347 = vmul.f32 %v305, %v342
    %v348 = vmul.f32 %v306, %v342
    %v349 = vmul.f32 %v307, %v342
    %v350 = vmul.f32 %v308, %v342
    %s351 = sld [smem:[#allocation2 + $0x1]]
    %v352 = vstv %s351
    %v353 = vadd.f32 %v343, %v352
    %v354 = vadd.f32 %v344, %v352
    %v355 = vadd.f32 %v345, %v352
    %v356 = vadd.f32 %v346, %v352
    %v357 = vadd.f32 %v347, %v352
    %v358 = vadd.f32 %v348, %v352
    %v359 = vadd.f32 %v349, %v352
    %v360 = vadd.f32 %v350, %v352
    %361 = vst [vmem:[%s5] sm:$0xff] %v353
    %362 = vst [vmem:[%s5 + $0x8] sm:$0xff] %v354
    %363 = vst [vmem:[%s5 + $0x10] sm:$0xff] %v355
    %364 = vst [vmem:[%s5 + $0x18] sm:$0xff] %v356
    %365 = vst [vmem:[%s5 + $0x20] sm:$0xff] %v357
    %366 = vst [vmem:[%s5 + $0x28] sm:$0xff] %v358
    %367 = vst [vmem:[%s5 + $0x30] sm:$0xff] %v359
    %368 = vst [vmem:[%s5 + $0x38] sm:$0xff] %v360
    %v369 = vsub.f32 %v37, %v353
    %v370 = vsub.f32 %v38, %v354
    %v371 = vsub.f32 %v39, %v355
    %v372 = vsub.f32 %v40, %v356
    %v373 = vsub.f32 %v41, %v357
    %v374 = vsub.f32 %v42, %v358
    %v375 = vsub.f32 %v43, %v359
    %v376 = vsub.f32 %v44, %v360
    %v377 = vand.u32 2147483647, %v369
    %v378 = vand.u32 2147483647, %v370
    %v379 = vand.u32 2147483647, %v371
    %v380 = vand.u32 2147483647, %v372
    %v381 = vand.u32 2147483647, %v373
    %v382 = vand.u32 2147483647, %v374
    %v383 = vand.u32 2147483647, %v375
    %v384 = vand.u32 2147483647, %v376
    %v385 = vadd.f32 %v377, %v378
    %v386 = vadd.f32 %v385, %v379
    %v387 = vadd.f32 %v386, %v380
    %v388 = vadd.f32 %v387, %v381
    %v389 = vadd.f32 %v388, %v382
    %v390 = vadd.f32 %v389, %v383
    %v391 = vadd.f32 %v390, %v384
    %392 = vadd.xlane.f32.xlu0 %v391
    %v393 = vpop.xlane.xlu0 %392
    %v394 = vrot.slane %v393, 4
    %v395 = vadd.f32 %v393, %v394
    %v396 = vrot.slane %v395, 2
    %v397 = vadd.f32 %v395, %v396
    %v398 = vrot.slane %v397, 1
    %v399 = vadd.f32 %v397, %v398
    %s400 = vtos %v399
    %v401 = vrcp.pop 8192.0
    %s402 = vtos %v401
    %s403 = smul.f32 %s400, %s402
    %s404 = scalar_lea.smem [#allocation5], 0
    %405 = sst [smem:[%s404]] %s403
    // Predicated region
    $region26: #{simmim_forward.1} parent=1 // pred_check
      _
    $region27: #{simmim_forward.1} parent=1 // pred_check_branch
      %407 = sbr.rel (0) target = $region29
    $region28: #{simmim_forward.1} parent=1 // pred_region
      _
    $region29: #{simmim_forward.1} parent=1 // pred_fallthru
      _
    // Predicated region
    $region30: #{simmim_forward.1} parent=1 // pred_check
      _
    $region31: #{simmim_forward.1} parent=1 // pred_check_branch
      %409 = sbr.rel (0) target = $region33
    $region32: #{simmim_forward.1} parent=1 // pred_region
      %s411 = ssub.s32 16, 16
      %412 = vsyncadd [#allocation3], %s411
      %415 = dma.smem_to_hbm [#allocation5], 16, %s6, [#allocation3]
    $region33: #{simmim_forward.1} parent=1 // pred_fallthru
      _
    // Predicated region
    $region34: #{simmim_forward.1} parent=1 // pred_check
      _
    $region35: #{simmim_forward.1} parent=1 // pred_check_branch
      %417 = sbr.rel (0) target = $region37
    $region36: #{simmim_forward.1} parent=1 // pred_region
      _
    $region37: #{simmim_forward.1} parent=1 // pred_fallthru
      _
    // Predicated region
    $region38: #{simmim_forward.1} parent=1 // pred_check
      _
    $region39: #{simmim_forward.1} parent=1 // pred_check_branch
      %419 = sbr.rel (0) target = $region41
    $region40: #{simmim_forward.1} parent=1 // pred_region
      %420 = dma.done [#allocation3], 16
    $region41: #{simmim_forward.1} parent=1 // pred_fallthru
      _
    %421 = sfence
    %422 = vsyncpa [#allocation3], 1
    %423 = vsyncpa [#allocation4], 1

</llo_original>
